<compile_context>
chip_gen: v7x
topology: tpu7x:2x2x1
jax: 0.10.0
libtpu: 0.0.40
codegen_flags: <defaults>
</compile_context>

<pallas_src>
import numpy as np
import jax
import jax.numpy as jnp
from jax.experimental import pallas as pl
from jax.experimental.pallas import tpu as pltpu


def _hbm_copy_kernel(vis_hbm, txt_hbm, vis_out_hbm, txt_out_hbm, sems):
    """Materializing identity copy: two whole-array HBM->HBM DMAs, overlapped."""
    cp_vis = pltpu.make_async_copy(vis_hbm, vis_out_hbm, sems.at[0])
    cp_txt = pltpu.make_async_copy(txt_hbm, txt_out_hbm, sems.at[1])
    cp_vis.start()
    cp_txt.start()
    cp_vis.wait()
    cp_txt.wait()


def clip_head_forward(visual_embed, textual_embed, captions=None, training=False,
                      *, use_pallas_copy=False):
    """JAX/Pallas equivalent of CLIPHead.forward (eval mode).

    Returns (outputs, losses) with outputs = [visual_embed, textual_embed] and
    losses = None, exactly like the PyTorch module in eval mode.

    use_pallas_copy=True returns *independent* output buffers produced by a
    direct HBM->HBM DMA copy (no VMEM round-trip).
    """
    del captions  # unused in eval mode (kept for signature parity with PyTorch)
    if training:
        # TODO(synk): loss evaluator (make_loss_evaluator) is not part of this module.
        raise NotImplementedError("training-mode loss evaluator not part of CLIPHead")

    if not use_pallas_copy:
        # Optimal path per perf review: pure passthrough, zero HBM traffic,
        # zero kernel-launch overhead.
        return [visual_embed, textual_embed], None

    vis_out, txt_out = pl.pallas_call(
        _hbm_copy_kernel,
        out_shape=(jax.ShapeDtypeStruct(visual_embed.shape, visual_embed.dtype),
                   jax.ShapeDtypeStruct(textual_embed.shape, textual_embed.dtype)),
        # No grid: a single invocation; the DMA engines do all the work.
        in_specs=[pl.BlockSpec(memory_space=pl.ANY),
                  pl.BlockSpec(memory_space=pl.ANY)],
        out_specs=(pl.BlockSpec(memory_space=pl.ANY),
                   pl.BlockSpec(memory_space=pl.ANY)),
        scratch_shapes=[pltpu.SemaphoreType.DMA((2,))],
    )(visual_embed, textual_embed)

    return [vis_out, txt_out], None


if __name__ == "__main__":
    key = jax.random.PRNGKey(0)
    k1, k2 = jax.random.split(key)

    # Small shapes implied by the forward: [batch, embed_dim] embeddings.
    B, Dv, Dt = 16, 128, 64
    visual_embed = jax.random.normal(k1, (B, Dv), dtype=jnp.float32)
    textual_embed = jax.random.normal(k2, (B, Dt), dtype=jnp.float32)

    vis_ref = np.asarray(visual_embed)
    txt_ref = np.asarray(textual_embed)

    # 1) Default (zero-copy) passthrough path — the optimal implementation.
    outputs0, losses0 = clip_head_forward(visual_embed, textual_embed, captions=None,
                                          training=False)
    assert losses0 is None
    assert np.array_equal(np.asarray(outputs0[0]), vis_ref)
    assert np.array_equal(np.asarray(outputs0[1]), txt_ref)

    # 2) Materializing Pallas copy path (fresh buffers via HBM->HBM DMA).
    outputs, losses = clip_head_forward(visual_embed, textual_embed, captions=None,
                                        training=False, use_pallas_copy=True)
    jax.block_until_ready(outputs)

    assert losses is None
    assert len(outputs) == 2
    assert outputs[0].shape == (B, Dv) and outputs[0].dtype == jnp.float32
    assert outputs[1].shape == (B, Dt) and outputs[1].dtype == jnp.float32
    assert np.array_equal(np.asarray(outputs[0]), vis_ref)
    assert np.array_equal(np.asarray(outputs[1]), txt_ref)

    # Inputs must remain valid / unmodified (no donation or aliasing).
    assert np.array_equal(np.asarray(visual_embed), vis_ref)
    assert np.array_equal(np.asarray(textual_embed), txt_ref)

    print("KERNEL_OK")
</pallas_src>

<mosaic_0001>
module attributes {stable_mosaic.version = 11 : i64} {
  func.func @_hbm_copy_kernel(%arg0: memref<16x128xf32, #tpu.memory_space<any>>, %arg1: memref<16x64xf32, #tpu.memory_space<any>>, %arg2: memref<16x128xf32, #tpu.memory_space<any>>, %arg3: memref<16x64xf32, #tpu.memory_space<any>>, %arg4: memref<2x!tpu.dma_semaphore, #tpu.memory_space<semaphore_mem>>) attributes {dimension_semantics = [], scalar_prefetch = 0 : i64, scratch_operands = 1 : i64, tpu.core_type = #tpu.core_type<tc>} {
    %c0_i32 = arith.constant 0 : i32
    %0 = tpu.memref_slice %arg4[%c0_i32] : memref<2x!tpu.dma_semaphore, #tpu.memory_space<semaphore_mem>> -> memref<1x!tpu.dma_semaphore, #tpu.memory_space<semaphore_mem>>
    %1 = tpu.memref_squeeze %0 : memref<1x!tpu.dma_semaphore, #tpu.memory_space<semaphore_mem>> -> memref<!tpu.dma_semaphore, #tpu.memory_space<semaphore_mem>>
    tpu.enqueue_dma source(%arg0 : memref<16x128xf32, #tpu.memory_space<any>>) target(%arg2 : memref<16x128xf32, #tpu.memory_space<any>>) target_semaphore(%1 : memref<!tpu.dma_semaphore, #tpu.memory_space<semaphore_mem>>)
    %c1_i32 = arith.constant 1 : i32
    %2 = tpu.memref_slice %arg4[%c1_i32] : memref<2x!tpu.dma_semaphore, #tpu.memory_space<semaphore_mem>> -> memref<1x!tpu.dma_semaphore, #tpu.memory_space<semaphore_mem>>
    %3 = tpu.memref_squeeze %2 : memref<1x!tpu.dma_semaphore, #tpu.memory_space<semaphore_mem>> -> memref<!tpu.dma_semaphore, #tpu.memory_space<semaphore_mem>>
    tpu.enqueue_dma source(%arg1 : memref<16x64xf32, #tpu.memory_space<any>>) target(%arg3 : memref<16x64xf32, #tpu.memory_space<any>>) target_semaphore(%3 : memref<!tpu.dma_semaphore, #tpu.memory_space<semaphore_mem>>)
    %c0_i32_0 = arith.constant 0 : i32
    %4 = tpu.memref_slice %arg4[%c0_i32_0] : memref<2x!tpu.dma_semaphore, #tpu.memory_space<semaphore_mem>> -> memref<1x!tpu.dma_semaphore, #tpu.memory_space<semaphore_mem>>
    %5 = tpu.memref_squeeze %4 : memref<1x!tpu.dma_semaphore, #tpu.memory_space<semaphore_mem>> -> memref<!tpu.dma_semaphore, #tpu.memory_space<semaphore_mem>>
    tpu.wait_dma2 semaphore(%5 : memref<!tpu.dma_semaphore, #tpu.memory_space<semaphore_mem>>) src(%arg0 : memref<16x128xf32, #tpu.memory_space<any>>) dst(%arg2 : memref<16x128xf32, #tpu.memory_space<any>>)
    %c1_i32_1 = arith.constant 1 : i32
    %6 = tpu.memref_slice %arg4[%c1_i32_1] : memref<2x!tpu.dma_semaphore, #tpu.memory_space<semaphore_mem>> -> memref<1x!tpu.dma_semaphore, #tpu.memory_space<semaphore_mem>>
    %7 = tpu.memref_squeeze %6 : memref<1x!tpu.dma_semaphore, #tpu.memory_space<semaphore_mem>> -> memref<!tpu.dma_semaphore, #tpu.memory_space<semaphore_mem>>
    tpu.wait_dma2 semaphore(%7 : memref<!tpu.dma_semaphore, #tpu.memory_space<semaphore_mem>>) src(%arg1 : memref<16x64xf32, #tpu.memory_space<any>>) dst(%arg3 : memref<16x64xf32, #tpu.memory_space<any>>)
    return
  }
}

</mosaic_0001>

<llo_original>
// kernel: tpu_custom_call.1
$region0: #{tpu_custom_call.1}
  #allocation0 [shape = 'u32[]', space=smem, size = 0x4, offset = 0x4, fixed_abs, tag = 'smem constant byte address 0x4 - core index']
  #allocation1 [shape = 'u32[144,128]{1,0:T(1,128)}', space=vmem, size = 0x12000, scoped, tag = 'internal scratch']
  #allocation2 [shape = 's32[2]{0}', space=sflag, size = 0x8, scoped, tag = 'scratch operand']
  #allocation3 [shape = 's32[]', space=sflag, size = 0x4, offset = 0, fixed_abs, tag = 'sflag constant byte address 0x0 - dummy sync flag']
  #allocation4 [shape = 'u32[0]{0}', space=smem, size = 0, offset = 0, fixed_abs, tag = 'smem constant byte address 0x0 - null']
  #allocation5 [shape = 's32[]', space=sflag, size = 0x4, offset = 0, fixed_abs, tag = 'sflag constant byte address 0x0 - dummy sync flag']
  #allocation6 [shape = 'u32[0]{0}', space=smem, size = 0, offset = 0, fixed_abs, tag = 'smem constant byte address 0x0 - null']
  %s0 = inlined_call_operand.hbm [shape: f32[16,128], index: 0, kind: input, shape index: {}]
  %s1 = inlined_call_operand.hbm [shape: f32[16,64], index: 1, kind: input, shape index: {}]
  %s2 = inlined_call_operand.hbm [shape: f32[16,128], index: 2, kind: output, shape index: {0}]
  %s3 = inlined_call_operand.hbm [shape: f32[16,64], index: 3, kind: output, shape index: {1}]
  %4 = xla_tuple %s2, %s3
  %s5 = sld [smem:[#allocation0]]
  $region2: #{tpu_custom_call.1} parent=0
    _
  %s7 = ssub.s32 1, %s5
  %s8 = scalar_select 0, %s7, %s5
  %s10 = sshll.u32 1, 14
  %s11 = sxor.u32 4294967295, %s10
  %s14 = sshll.u32 3, 24
  %s15 = sxor.u32 4294967295, %s14
  %s16 = sand.u32 0, %s15
  %s18 = sor.u32 %s16, 0
  %21 = dma.general %s0, 256, %s2, [#allocation2], [#allocation3], [#allocation4], %s18, 0
  %s22 = scalar_lea.sflag [#allocation2], 1
  %s24 = sshll.u32 1, 14
  %s25 = sxor.u32 4294967295, %s24
  %s28 = sshll.u32 3, 24
  %s29 = sxor.u32 4294967295, %s28
  %s30 = sand.u32 0, %s29
  %s32 = sor.u32 %s30, 0
  %35 = dma.general %s1, 256, %s3, %s22, [#allocation5], [#allocation6], %s32, 0
  %s36 = smul.u32 16, 1
  %s37 = sshll.u32 %s36, 4
  %38 = dma.done [#allocation2], %s37
  %s39 = sshll.u32 %s36, 4
  %40 = dma.done %s22, %s39
  %41 = vsyncmov [#allocation2]
  %s42 = vpop.sfrf %41
  %p43 = scmp.eq.s32.totalorder %s42, 0
  %p44 = pneg %p43
  %46 = shalt.err (%p44)
  %s47 = scalar_lea.sflag [#allocation2], 1
  %48 = vsyncmov %s47
  %s49 = vpop.sfrf %48
  %p50 = scmp.eq.s32.totalorder %s49, 0
  %p51 = pneg %p50
  %53 = shalt.err (%p51)

</llo_original>
